<compile_context>
chip_gen: v6e
topology: v6e:2x2x1
jax: 0.10.0
libtpu: 0.0.40
codegen_flags: <defaults>
</compile_context>

<pallas_src>
import jax
import jax.numpy as jnp
from jax.experimental import pallas as pl
from jax.experimental.pallas import tpu as pltpu

_LANES = 128                      # vreg lane width; also the module's hidden size
_VMEM_LIMIT = 32 * 1024 * 1024    # explicit scoped-VMEM limit (portable v5e/v6e/v7x)


def _round_up(x, m):
    return (x + m - 1) // m * m


# --------------------------------------------------------------------------- #
# Prologue: state linear + ReLU + BatchNorm1d (training-mode batch statistics).
# Whole batch in one call -- BN stats are a full-batch reduction, and the data
# is tiny (~100 B/row), so this stays gridless by design.
# --------------------------------------------------------------------------- #
def state_bn_kernel(state_ref, ws_ref, bs_ref, gamma_ref, beta_ref, hn_ref):
    eps = 1e-5
    h = jnp.dot(state_ref[...], ws_ref[...], preferred_element_type=jnp.float32)
    h = jnp.maximum(h + bs_ref[...], 0.0)

    # One-pass batch stats, clamped (avoids rsqrt of a slightly negative var),
    # with the affine folded into a single multiply-add per element.
    mean = jnp.mean(h, axis=0, keepdims=True)
    mean_sq = jnp.mean(h * h, axis=0, keepdims=True)
    var = jnp.maximum(mean_sq - mean * mean, 0.0)
    scale = gamma_ref[...] * jax.lax.rsqrt(var + eps)
    shift = beta_ref[...] - mean * scale
    hn_ref[...] = (h * scale + shift).astype(hn_ref.dtype)


# --------------------------------------------------------------------------- #
# Main MLP: batch-gridded. Layer 0 uses the mathematically identical split
# matmul hn @ W0[:S] + action @ W0[S:] instead of an in-kernel lane concat.
# Final 128->1 layer is a VPU multiply + lane reduction (no N=1 MXU pass).
# --------------------------------------------------------------------------- #
def mlp_kernel(hn_ref, action_ref,
               w0s_ref, w0a_ref, b0_ref,
               w1_ref, b1_ref,
               w2_ref, b2_ref,
               wf_row_ref, bf_ref,
               out_ref):
    mxu_dtype = w1_ref.dtype  # bf16 by default (f32 if disabled in wrapper)

    x = (jnp.dot(hn_ref[...], w0s_ref[...], preferred_element_type=jnp.float32)
         + jnp.dot(action_ref[...], w0a_ref[...], preferred_element_type=jnp.float32)
         + b0_ref[...])
    x = jnp.maximum(x, 0.0)

    x = jnp.maximum(
        jnp.dot(x.astype(mxu_dtype), w1_ref[...],
                preferred_element_type=jnp.float32) + b1_ref[...], 0.0)
    x = jnp.maximum(
        jnp.dot(x.astype(mxu_dtype), w2_ref[...],
                preferred_element_type=jnp.float32) + b2_ref[...], 0.0)

    # Final layer (128 -> 1): VPU multiply + lane reduction; bf is an SMEM scalar.
    q = jnp.sum(x * wf_row_ref[...], axis=-1, keepdims=True) + bf_ref[0]
    out_ref[...] = q


def critic_forward(state, action, params, *, mxu_dtype=jnp.bfloat16, block_rows=512):
    """Critic forward pass. Set mxu_dtype=jnp.float32 for exact f32 matmuls."""
    B, S = state.shape
    A = action.shape[1]
    H = params["w1"].shape[0]

    vmem = pl.BlockSpec(memory_space=pltpu.MemorySpace.VMEM)
    smem = pl.BlockSpec(memory_space=pltpu.MemorySpace.SMEM)

    # ---- Prologue: hn = BN(relu(state @ Ws + bs)), emitted directly in the MXU
    # dtype so the gridded MLP reads half the bytes. ----------------------------
    hn = pl.pallas_call(
        state_bn_kernel,
        out_shape=jax.ShapeDtypeStruct((B, S), mxu_dtype),
        in_specs=[vmem] * 5,
        out_specs=vmem,
        compiler_params=pltpu.CompilerParams(vmem_limit_bytes=_VMEM_LIMIT),
    )(state.astype(jnp.float32), params["ws"], params["bs"],
      params["gamma"], params["beta"])

    # ---- Batch tiling for the MLP. Pad AFTER the BN prologue so the padding
    # rows never contaminate batch statistics; they are sliced off at the end. --
    tb = _round_up(min(block_rows, _round_up(B, 8)), 8)
    b_pad = _round_up(B, tb)
    act = action.astype(mxu_dtype)
    if b_pad != B:
        hn = jnp.pad(hn, ((0, b_pad - B), (0, 0)))
        act = jnp.pad(act, ((0, b_pad - B), (0, 0)))

    def mx(w):  # cast only the MXU weight tiles
        return w.astype(mxu_dtype)

    grid = (b_pad // tb,)
    out = pl.pallas_call(
        mlp_kernel,
        out_shape=jax.ShapeDtypeStruct((b_pad, 1), jnp.float32),
        grid=grid,
        in_specs=[
            pl.BlockSpec((tb, S), lambda i: (i, 0)),     # hn
            pl.BlockSpec((tb, A), lambda i: (i, 0)),     # action
            pl.BlockSpec((S, H), lambda i: (0, 0)),      # w0s
            pl.BlockSpec((A, H), lambda i: (0, 0)),      # w0a
            pl.BlockSpec((1, H), lambda i: (0, 0)),      # b0
            pl.BlockSpec((H, H), lambda i: (0, 0)),      # w1
            pl.BlockSpec((1, H), lambda i: (0, 0)),      # b1
            pl.BlockSpec((H, H), lambda i: (0, 0)),      # w2
            pl.BlockSpec((1, H), lambda i: (0, 0)),      # b2
            pl.BlockSpec((1, H), lambda i: (0, 0)),      # wf_row
            smem,                                        # bf (scalar, SMEM)
        ],
        out_specs=pl.BlockSpec((tb, 1), lambda i: (i, 0)),
        compiler_params=pltpu.CompilerParams(
            dimension_semantics=("parallel",),           # megacore on v7x
            vmem_limit_bytes=_VMEM_LIMIT),
    )(hn, act,
      mx(params["w0s"]), mx(params["w0a"]), params["b0"],
      mx(params["w1"]), params["b1"],
      mx(params["w2"]), params["b2"],
      params["wf_row"], params["bf"])

    return out[:B]


def make_params(key, state_size, action_size, hidden_nodes=128):
    """Deterministic init mirroring the PyTorch module's init ranges (f32 masters).

    Note: init_hidden uses weight.size()[0] == out_features, so hidden layers use
    lim = sqrt(1/hidden_nodes) and the state layer lim = sqrt(1/state_size),
    matching the original module exactly. Biases use the same bound (they are
    kernel inputs either way)."""
    ks = jax.random.split(key, 10)
    input_size = state_size + action_size

    def unif(k, shape, lim):
        return jax.random.uniform(k, shape, jnp.float32, -lim, lim)

    lim_s = (1.0 / state_size) ** 0.5
    ws = unif(ks[0], (state_size, state_size), lim_s)       # [in, out] (pre-transposed)
    bs = unif(ks[1], (1, state_size), lim_s)

    gamma = jnp.ones((1, state_size), jnp.float32)          # BatchNorm1d affine
    beta = jnp.zeros((1, state_size), jnp.float32)

    lim_h = (1.0 / hidden_nodes) ** 0.5
    w0 = unif(ks[2], (input_size, hidden_nodes), lim_h)
    b0 = unif(ks[3], (1, hidden_nodes), lim_h)
    w0s, w0a = w0[:state_size, :], w0[state_size:, :]

    w1 = unif(ks[4], (hidden_nodes, hidden_nodes), lim_h)
    b1 = unif(ks[5], (1, hidden_nodes), lim_h)
    w2 = unif(ks[6], (hidden_nodes, hidden_nodes), lim_h)
    b2 = unif(ks[7], (1, hidden_nodes), lim_h)

    wf_row = unif(ks[8], (1, hidden_nodes), 0.003)          # final layer as a lane row
    bf = unif(ks[9], (1,), 0.003)                           # scalar bias (SMEM)

    return dict(ws=ws, bs=bs, gamma=gamma, beta=beta,
                w0s=w0s, w0a=w0a, b0=b0,
                w1=w1, b1=b1, w2=w2, b2=b2,
                wf_row=wf_row, bf=bf)


def critic_reference(state, action, p, *, mxu_dtype=jnp.bfloat16):
    """Pure-JAX reference mirroring the kernel's math (incl. the bf16 MXU cast)."""
    eps = 1e-5
    h = jnp.maximum(state @ p["ws"] + p["bs"], 0.0)
    mean = jnp.mean(h, axis=0, keepdims=True)
    var = jnp.maximum(jnp.mean(h * h, axis=0, keepdims=True) - mean * mean, 0.0)
    hn = (h - mean) * jax.lax.rsqrt(var + eps) * p["gamma"] + p["beta"]

    # True concatenated layer-0 matmul (validates the kernel's split matmul).
    x_cat = jnp.concatenate([hn, action], axis=-1).astype(mxu_dtype)
    w0 = jnp.concatenate([p["w0s"], p["w0a"]], axis=0).astype(mxu_dtype)
    x = jnp.maximum(jnp.dot(x_cat, w0,
                            preferred_element_type=jnp.float32) + p["b0"], 0.0)
    x = jnp.maximum(jnp.dot(x.astype(mxu_dtype), p["w1"].astype(mxu_dtype),
                            preferred_element_type=jnp.float32) + p["b1"], 0.0)
    x = jnp.maximum(jnp.dot(x.astype(mxu_dtype), p["w2"].astype(mxu_dtype),
                            preferred_element_type=jnp.float32) + p["b2"], 0.0)
    return jnp.sum(x * p["wf_row"], axis=-1, keepdims=True) + p["bf"]


if __name__ == "__main__":
    batch = 8
    state_size = 16
    action_size = 8

    key = jax.random.PRNGKey(0)
    kp, ks, ka = jax.random.split(key, 3)
    params = make_params(kp, state_size, action_size)
    state = jax.random.normal(ks, (batch, state_size), jnp.float32)
    action = jax.random.normal(ka, (batch, action_size), jnp.float32)

    out = critic_forward(state, action, params)
    jax.block_until_ready(out)

    ref = critic_reference(state, action, params)
    assert out.shape == (batch, 1), out.shape
    assert jnp.allclose(out, ref, atol=1e-3, rtol=1e-2), (out, ref)
    print("KERNEL_OK")
</pallas_src>

<mosaic_0001>
module attributes {stable_mosaic.version = 11 : i64} {
  func.func @state_bn_kernel(%arg0: memref<8x16xf32, #tpu.memory_space<vmem>>, %arg1: memref<16x16xf32, #tpu.memory_space<vmem>>, %arg2: memref<1x16xf32, #tpu.memory_space<vmem>>, %arg3: memref<1x16xf32, #tpu.memory_space<vmem>>, %arg4: memref<1x16xf32, #tpu.memory_space<vmem>>, %arg5: memref<8x16xbf16, #tpu.memory_space<vmem>>) attributes {dimension_semantics = [], scalar_prefetch = 0 : i64, scratch_operands = 0 : i64, tpu.core_type = #tpu.core_type<tc>} {
    %c0 = arith.constant 0 : index
    %c0_0 = arith.constant 0 : index
    %0 = vector.load %arg0[%c0, %c0_0] : memref<8x16xf32, #tpu.memory_space<vmem>>, vector<8x16xf32>
    %c0_1 = arith.constant 0 : index
    %c0_2 = arith.constant 0 : index
    %1 = vector.load %arg1[%c0_1, %c0_2] : memref<16x16xf32, #tpu.memory_space<vmem>>, vector<16x16xf32>
    %cst = arith.constant dense<0.000000e+00> : vector<8x16xf32>
    %2 = tpu.matmul %0, %1, %cst {dimension_numbers = #tpu.dot_dimension_numbers<[1], [0], [0], [1], [0, 0, 1, 1], [], []>} : vector<8x16xf32>, vector<16x16xf32>, vector<8x16xf32> -> vector<8x16xf32>
    %c0_3 = arith.constant 0 : index
    %c0_4 = arith.constant 0 : index
    %3 = vector.load %arg2[%c0_3, %c0_4] : memref<1x16xf32, #tpu.memory_space<vmem>>, vector<1x16xf32>
    %4 = vector.broadcast %3 : vector<1x16xf32> to vector<8x16xf32>
    %5 = arith.addf %2, %4 : vector<8x16xf32>
    %cst_5 = arith.constant 0.000000e+00 : f32
    %6 = vector.broadcast %cst_5 : f32 to vector<8x16xf32>
    %7 = arith.maximumf %5, %6 : vector<8x16xf32>
    %cst_6 = arith.constant dense<0.000000e+00> : vector<16xf32>
    %8 = vector.multi_reduction <add>, %7, %cst_6 [0] : vector<8x16xf32> to vector<16xf32>
    %9 = vector.shape_cast %8 : vector<16xf32> to vector<1x16xf32>
    %cst_7 = arith.constant 8.000000e+00 : f32
    %10 = vector.broadcast %cst_7 : f32 to vector<1x16xf32>
    %11 = arith.divf %9, %10 : vector<1x16xf32>
    %12 = arith.mulf %7, %7 : vector<8x16xf32>
    %cst_8 = arith.constant dense<0.000000e+00> : vector<16xf32>
    %13 = vector.multi_reduction <add>, %12, %cst_8 [0] : vector<8x16xf32> to vector<16xf32>
    %14 = vector.shape_cast %13 : vector<16xf32> to vector<1x16xf32>
    %cst_9 = arith.constant 8.000000e+00 : f32
    %15 = vector.broadcast %cst_9 : f32 to vector<1x16xf32>
    %16 = arith.divf %14, %15 : vector<1x16xf32>
    %17 = arith.mulf %11, %11 : vector<1x16xf32>
    %18 = arith.subf %16, %17 : vector<1x16xf32>
    %cst_10 = arith.constant 0.000000e+00 : f32
    %19 = vector.broadcast %cst_10 : f32 to vector<1x16xf32>
    %20 = arith.maximumf %18, %19 : vector<1x16xf32>
    %c0_11 = arith.constant 0 : index
    %c0_12 = arith.constant 0 : index
    %21 = vector.load %arg3[%c0_11, %c0_12] : memref<1x16xf32, #tpu.memory_space<vmem>>, vector<1x16xf32>
    %cst_13 = arith.constant 9.99999974E-6 : f32
    %22 = vector.broadcast %cst_13 : f32 to vector<1x16xf32>
    %23 = arith.addf %20, %22 : vector<1x16xf32>
    %24 = math.rsqrt %23 : vector<1x16xf32>
    %25 = arith.mulf %21, %24 : vector<1x16xf32>
    %c0_14 = arith.constant 0 : index
    %c0_15 = arith.constant 0 : index
    %26 = vector.load %arg4[%c0_14, %c0_15] : memref<1x16xf32, #tpu.memory_space<vmem>>, vector<1x16xf32>
    %27 = arith.mulf %11, %25 : vector<1x16xf32>
    %28 = arith.subf %26, %27 : vector<1x16xf32>
    %29 = vector.broadcast %25 : vector<1x16xf32> to vector<8x16xf32>
    %30 = arith.mulf %7, %29 : vector<8x16xf32>
    %31 = vector.broadcast %28 : vector<1x16xf32> to vector<8x16xf32>
    %32 = arith.addf %30, %31 : vector<8x16xf32>
    %33 = arith.truncf %32 : vector<8x16xf32> to vector<8x16xbf16>
    %c0_16 = arith.constant 0 : index
    %c0_17 = arith.constant 0 : index
    %34 = vector.load %arg5[%c0_16, %c0_17] : memref<8x16xbf16, #tpu.memory_space<vmem>>, vector<8x16xbf16>
    tpu.vector_store %arg5[%c0_16, %c0_17], %33 {strides = array<i32>} : memref<8x16xbf16, #tpu.memory_space<vmem>>, vector<8x16xbf16>,
    return
  }
}

</mosaic_0001>

<llo_original>
// kernel: tpu_custom_call.1
$region0: #{tpu_custom_call.1}
  #allocation0 [shape = 'u32[]', space=smem, size = 0x4, offset = 0x4, fixed_abs, tag = 'smem constant byte address 0x4 - core index']
  #allocation1 [shape = 'u32[144,128]{1,0:T(1,128)}', space=vmem, size = 0x12000, scoped, tag = 'internal scratch']
  %s0 = inlined_call_operand.hbm [shape: f32[8,16], index: 0, kind: input, shape index: {}]
  %s1 = inlined_call_operand.hbm [shape: f32[16,16], index: 1, kind: input, shape index: {}]
  %s2 = inlined_call_operand.vmem [shape: f32[1,16], index: 2, kind: input, shape index: {}]
  %s3 = inlined_call_operand.vmem [shape: f32[1,16], index: 3, kind: input, shape index: {}]
  %s4 = inlined_call_operand.vmem [shape: f32[1,16], index: 4, kind: input, shape index: {}]
  %s5 = inlined_call_operand.hbm [shape: bf16[8,16], index: 5, kind: output, shape index: {}]
  %s6 = sld [smem:[#allocation0]]
  $region38: #{tpu_custom_call.1} parent=0
    _
  %s8 = ssub.s32 1, %s6
  %s9 = scalar_select 0, %s8, %s6
  $region1: #{tpu_custom_call.1} parent=0
    #allocation2 [shape = 'u8[4096]{0}', space=vmem, size = 0x1000, scoped, tag = 'input window, operand 0, single buffered']
    #allocation3 [shape = 's32[1]{0}', space=sflag, size = 0x4, scoped, tag = 'scoped memory for tpu_custom_call.1']
    #allocation4 [shape = 's32[1]{0}', space=sflag, size = 0x4, scoped, tag = 'scoped memory for tpu_custom_call.1']
    #allocation5 [shape = 'u8[8192]{0}', space=vmem, size = 0x2000, scoped, tag = 'input window, operand 1, single buffered']
    #allocation6 [shape = 's32[1]{0}', space=sflag, size = 0x4, scoped, tag = 'scoped memory for tpu_custom_call.1']
    #allocation7 [shape = 'u8[2048]{0}', space=vmem, size = 0x800, scoped, tag = 'output window, operand 0, single buffered']
    %10 = vsyncpa [#allocation3], 0
    %11 = vsyncpa [#allocation6], 0
    %12 = vsyncpa [#allocation4], 0
    // Predicated region
    $region2: #{tpu_custom_call.1} parent=1 // pred_check
      _
    $region3: #{tpu_custom_call.1} parent=1 // pred_check_branch
      %14 = sbr.rel (0) target = $region5
    $region4: #{tpu_custom_call.1} parent=1 // pred_region
      %s16 = ssub.s32 128, 128
      %17 = vsyncadd [#allocation3], %s16
      %s19 = sshll.u32 [#allocation2], 4
      %s20 = int_to_ptr.vmem [resolvable:$true] %s19
      %22 = dma.hbm_to_vmem [thread:$0]  %s0, 128, %s20, [#allocation3]
    $region5: #{tpu_custom_call.1} parent=1 // pred_fallthru
      _
    // Predicated region
    $region6: #{tpu_custom_call.1} parent=1 // pred_check
      _
    $region7: #{tpu_custom_call.1} parent=1 // pred_check_branch
      %24 = sbr.rel (0) target = $region9
    $region8: #{tpu_custom_call.1} parent=1 // pred_region
      %s26 = ssub.s32 256, 256
      %27 = vsyncadd [#allocation6], %s26
      %s28 = sshll.u32 [#allocation5], 4
      %s29 = int_to_ptr.vmem [resolvable:$true] %s28
      %34 = dma.hbm_to_vmem [thread:$0]  %s1, 256, %s29, [#allocation6], 128, 128, 8
    $region9: #{tpu_custom_call.1} parent=1 // pred_fallthru
      _
    // Predicated region
    $region10: #{tpu_custom_call.1} parent=1 // pred_check
      _
    $region11: #{tpu_custom_call.1} parent=1 // pred_check_branch
      %36 = sbr.rel (0) target = $region13
    $region12: #{tpu_custom_call.1} parent=1 // pred_region
      _
    $region13: #{tpu_custom_call.1} parent=1 // pred_fallthru
      _
    // Predicated region
    $region14: #{tpu_custom_call.1} parent=1 // pred_check
      _
    $region15: #{tpu_custom_call.1} parent=1 // pred_check_branch
      %38 = sbr.rel (0) target = $region17
    $region16: #{tpu_custom_call.1} parent=1 // pred_region
      _
    $region17: #{tpu_custom_call.1} parent=1 // pred_fallthru
      _
    // Predicated region
    $region18: #{tpu_custom_call.1} parent=1 // pred_check
      _
    $region19: #{tpu_custom_call.1} parent=1 // pred_check_branch
      %40 = sbr.rel (0) target = $region21
    $region20: #{tpu_custom_call.1} parent=1 // pred_region
      _
    $region21: #{tpu_custom_call.1} parent=1 // pred_fallthru
      _
    // Predicated region
    $region22: #{tpu_custom_call.1} parent=1 // pred_check
      _
    $region23: #{tpu_custom_call.1} parent=1 // pred_check_branch
      %42 = sbr.rel (0) target = $region25
    $region24: #{tpu_custom_call.1} parent=1 // pred_region
      %43 = dma.done [#allocation3], 128
    $region25: #{tpu_custom_call.1} parent=1 // pred_fallthru
      _
    // Predicated region
    $region26: #{tpu_custom_call.1} parent=1 // pred_check
      _
    $region27: #{tpu_custom_call.1} parent=1 // pred_check_branch
      %45 = sbr.rel (0) target = $region29
    $region28: #{tpu_custom_call.1} parent=1 // pred_region
      %46 = dma.done [#allocation6], 256
    $region29: #{tpu_custom_call.1} parent=1 // pred_fallthru
      _
    %v47 = vld [vmem:[#allocation2] sm:$0xff]
    %v48 = vld [vmem:[#allocation5] sm:$0xff]
    %v49 = vld [vmem:[#allocation5 + $0x8] sm:$0xff]
    %v50 = vld [vmem:[%s2] sm:$0x1]
    %v52 = vlaneseq
    %v53 = vshrl.u32 %v52, 7
    %v54 = vsub.s32 0, %v53
    %v55 = vrot.slane %v50, %v54
    %vm57 = vcmask 130048
    %v59 = vsel %vm57, %v47, 0
    %61 = vmatprep.subr.mxu0 0.0
    %62 = vmatpush1.msra.mxu0 0.0
    %63 = vmatprep.subr.mxu0 0.0
    %64 = vmatpush1.msra.mxu0 0.0
    %65 = vmatprep.subr.mxu0 0.0
    %66 = vmatpush1.msra.mxu0 0.0
    %67 = vmatprep.subr.mxu0 0.0
    %68 = vmatpush1.msra.mxu0 0.0
    %69 = vmatprep.subr.mxu0 0.0
    %70 = vmatpush1.msra.mxu0 0.0
    %71 = vmatprep.subr.mxu0 0.0
    %72 = vmatpush1.msra.mxu0 0.0
    %73 = vmatprep.subr.mxu0 0.0
    %74 = vmatpush1.msra.mxu0 0.0
    %75 = vmatprep.subr.mxu0 0.0
    %76 = vmatpush1.msra.mxu0 0.0
    %77 = vmatprep.subr.mxu0 0.0
    %78 = vmatpush1.msra.mxu0 0.0
    %79 = vmatprep.subr.mxu0 0.0
    %80 = vmatpush1.msra.mxu0 0.0
    %81 = vmatprep.subr.mxu0 0.0
    %82 = vmatpush1.msra.mxu0 0.0
    %83 = vmatprep.subr.mxu0 0.0
    %84 = vmatpush1.msra.mxu0 0.0
    %85 = vmatprep.subr.mxu0 0.0
    %86 = vmatpush1.msra.mxu0 0.0
    %87 = vmatprep.subr.mxu0 0.0
    %88 = vmatpush1.msra.mxu0 0.0
    %89 = vmatprep.subr.mxu0 0.0
    %90 = vmatpush1.msra.mxu0 %v49
    %91 = vmatprep.subr.mxu0 0.0
    %92 = vmatpush1.msra.mxu0 %v48
    %93 = vmatprep.subr.mxu0 0.0
    %94 = vmatpush2.msra.mxu0 0.0
    %95 = vmatprep.subr.mxu0 0.0
    %96 = vmatpush2.msra.mxu0 0.0
    %97 = vmatprep.subr.mxu0 0.0
    %98 = vmatpush2.msra.mxu0 0.0
    %99 = vmatprep.subr.mxu0 0.0
    %100 = vmatpush2.msra.mxu0 0.0
    %101 = vmatprep.subr.mxu0 0.0
    %102 = vmatpush2.msra.mxu0 0.0
    %103 = vmatprep.subr.mxu0 0.0
    %104 = vmatpush2.msra.mxu0 0.0
    %105 = vmatprep.subr.mxu0 0.0
    %106 = vmatpush2.msra.mxu0 0.0
    %107 = vmatprep.subr.mxu0 0.0
    %108 = vmatpush2.msra.mxu0 0.0
    %109 = vmatprep.subr.mxu0 0.0
    %110 = vmatpush2.msra.mxu0 0.0
    %111 = vmatprep.subr.mxu0 0.0
    %112 = vmatpush2.msra.mxu0 0.0
    %113 = vmatprep.subr.mxu0 0.0
    %114 = vmatpush2.msra.mxu0 0.0
    %115 = vmatprep.subr.mxu0 0.0
    %116 = vmatpush2.msra.mxu0 0.0
    %117 = vmatprep.subr.mxu0 0.0
    %118 = vmatpush2.msra.mxu0 0.0
    %119 = vmatprep.subr.mxu0 0.0
    %120 = vmatpush2.msra.mxu0 0.0
    %121 = vmatprep.subr.mxu0 0.0
    %122 = vmatpush2.msra.mxu0 0.0
    %123 = vmatprep.subr.mxu0 0.0
    %124 = vmatpush2.msra.mxu0 0.0
    %125 = vmatprep.mubr.f32.mxu0 0.0
    %126 = vmatmul.mubr.f32.gmra.mxu0 %v59
    %v127 = vpop.f32.mrf.mxu0
    %v128 = vadd.f32 %v55, %v127
    %v129 = vpop.f32.mrf.mxu0
    %130 = vdwg.mxu0
    %v131 = vmax.f32 %v128, 0.0
    %v132 = vsel %vm57, %v131, 0.0
    %v133 = vrot.slane %v132, 4
    %v134 = vadd.f32 %v132, %v133
    %v135 = vrot.slane %v134, 2
    %v136 = vadd.f32 %v134, %v135
    %v137 = vrot.slane %v136, 1
    %v138 = vadd.f32 %v136, %v137
    %v139 = vrcp.pop 8.0
    %v140 = vmul.f32 %v138, %v139
    %v141 = vmul.f32 %v131, %v131
    %v142 = vsel %vm57, %v141, 0.0
    %v143 = vrot.slane %v142, 4
    %v144 = vadd.f32 %v142, %v143
    %v145 = vrot.slane %v144, 2
    %v146 = vadd.f32 %v144, %v145
    %v147 = vrot.slane %v146, 1
    %v148 = vadd.f32 %v146, %v147
    %v149 = vmul.f32 %v148, %v139
    %v150 = vmul.f32 %v140, %v140
    %v151 = vsub.f32 %v149, %v150
    %v152 = vmax.f32 %v151, 0.0
    %v153 = vld [vmem:[%s3] sm:$0x1]
    %v154 = vadd.f32 %v152, 1e-05
    %v155 = vrsqrt.pop %v154
    %v156 = vmul.f32 %v153, %v155
    %v157 = vld [vmem:[%s4] sm:$0x1]
    %v158 = vmul.f32 %v140, %v156
    %v159 = vsub.f32 %v157, %v158
    %v161 = vlaneseq
    %v162 = vshrl.u32 %v161, 7
    %v163 = vsub.s32 0, %v162
    %v164 = vrot.slane %v156, %v163
    %v166 = vmul.f32 %v131, %v164
    %v168 = vlaneseq
    %v169 = vshrl.u32 %v168, 7
    %v170 = vsub.s32 0, %v169
    %v171 = vrot.slane %v159, %v170
    %v173 = vadd.f32 %v166, %v171
    %v174 = vpack.c.bf16 %v173, %v173
    %vm175 = vcmask 125952
    %176 = vst.msk [vmem:[#allocation7] sm:$0xf] %vm175, %v174
    // Predicated region
    $region30: #{tpu_custom_call.1} parent=1 // pred_check
      _
    $region31: #{tpu_custom_call.1} parent=1 // pred_check_branch
      %178 = sbr.rel (0) target = $region33
    $region32: #{tpu_custom_call.1} parent=1 // pred_region
      %s180 = ssub.s32 64, 64
      %181 = vsyncadd [#allocation4], %s180
      %s183 = sshll.u32 [#allocation7], 4
      %s184 = int_to_ptr.vmem [resolvable:$true] %s183
      %186 = dma.vmem_to_hbm [thread:$0]  %s184, 64, %s5, [#allocation4]
    $region33: #{tpu_custom_call.1} parent=1 // pred_fallthru
      _
    // Predicated region
    $region34: #{tpu_custom_call.1} parent=1 // pred_check
      _
    $region35: #{tpu_custom_call.1} parent=1 // pred_check_branch
      %188 = sbr.rel (0) target = $region37
    $region36: #{tpu_custom_call.1} parent=1 // pred_region
      %189 = dma.done [#allocation4], 64
    $region37: #{tpu_custom_call.1} parent=1 // pred_fallthru
      _
    %190 = vsyncpa [#allocation3], 1
    %191 = vsyncpa [#allocation6], 1
    %192 = vsyncpa [#allocation4], 1

</llo_original>
